<compile_context>
chip_gen: v6e
topology: v6e:2x2x1
jax: 0.10.0
libtpu: 0.0.40
codegen_flags: <defaults>
</compile_context>

<pallas_src>
import functools

import jax
import jax.numpy as jnp
import numpy as np
from jax.experimental import pallas as pl
from jax.experimental.pallas import tpu as pltpu

HIDDEN = 32  # demo hidden_dim (module default is 200; kernel handles any H)


def _round_up(v, m):
    return ((v + m - 1) // m) * m


# --------------------------------------------------------------------------- #
# Kernel
# --------------------------------------------------------------------------- #
def _disc_rnn_kernel(xy_ref, w_ref, b_ref, wfc_ref, bfc_ref, out_ref, hmax_ref,
                     *, seq_len, time_padded, act_dtype):
    """One (batch-tile, time-tile) grid step of the stateless-LSTM discriminator."""
    TB, TT, D = xy_ref.shape
    Hp = hmax_ref.shape[-1]                       # per-gate width, padded to 128 lanes
    t = pl.program_id(1)

    @pl.when(t == 0)
    def _init():
        hmax_ref[...] = jnp.full_like(hmax_ref, -jnp.inf)

    # Merge (batch, time) into the matmul M dim.  TT is a multiple of 16, so this
    # sublane merge of the bf16 input tile is a free view (no relayout copy).
    x2d = xy_ref[...].reshape(TB * TT, D)

    # Single fused matmul for the three live gates (i, g, o).  Each gate occupies
    # a 128-lane-aligned [*, Hp] slab, so the slices below need no relayout.
    s = jnp.dot(x2d, w_ref[...], preferred_element_type=jnp.float32) + b_ref[...]
    s = s.astype(act_dtype)                       # bf16 EUP path on v6e/v7x

    i_g = jax.nn.sigmoid(s[:, 0:Hp])
    g_g = jnp.tanh(s[:, Hp:2 * Hp])
    o_g = jax.nn.sigmoid(s[:, 2 * Hp:3 * Hp])
    # Stateless LSTMCell (h0 = c0 = 0): c = i*g, h = o*tanh(c).
    h = (o_g * jnp.tanh(i_g * g_g)).astype(jnp.float32)

    # Streaming max over time (== MaxPool1d(T)).
    h_bt = h.reshape(TB, TT, Hp)
    if time_padded:
        t_idx = jax.lax.broadcasted_iota(jnp.int32, (TB, TT, Hp), 1) + t * TT
        h_bt = jnp.where(t_idx < seq_len, h_bt, -jnp.inf)
    hmax_ref[...] = jnp.maximum(hmax_ref[...], jnp.max(h_bt, axis=1))

    @pl.when(t == pl.num_programs(1) - 1)
    def _finalize():
        # Linear(H, 1) + Sigmoid as a VPU lane-reduce (an N=1 MXU matmul is wasted).
        logits = jnp.sum(hmax_ref[...] * wfc_ref[...], axis=-1, keepdims=True)
        out_ref[...] = jax.nn.sigmoid(logits + bfc_ref[0])


# --------------------------------------------------------------------------- #
# Per-chip sizing
# --------------------------------------------------------------------------- #
def _chip_profile():
    """Return (vmem_limit_bytes, per-step VMEM budget, use bf16 activations)."""
    kind = ""
    try:
        kind = jax.devices()[0].device_kind.lower()
    except Exception:
        pass
    is_v7 = "v7" in kind
    is_v6 = "v6" in kind
    phys = 64 * 1024 * 1024 if is_v7 else 128 * 1024 * 1024
    try:  # prefer the real number when the query is available
        info = pltpu.get_tpu_info()
        phys = int(getattr(info, "vmem_capacity_bytes", phys)) or phys
    except Exception:
        pass
    if is_v7:
        limit, budget = 56 << 20, 44 << 20        # 64 MiB physical VMEM
    elif is_v6:
        limit, budget = 96 << 20, 80 << 20        # 128 MiB physical VMEM
    else:                                         # v5e / v5p / unknown: conservative
        limit, budget = 64 << 20, 48 << 20
    limit = min(limit, int(phys * 0.875))
    budget = min(budget, limit - (8 << 20))
    use_bf16_act = is_v6 or is_v7                 # v5e has no bf16 VPU/EUP path
    return limit, budget, use_bf16_act


def _vmem_step_bytes(TB, TT, D, Hp, act_bytes):
    """Conservative per-grid-step VMEM footprint using LAYOUT-PADDED sizes
    (last dim pads to 128 lanes, second-to-last to the dtype sublane pack)."""
    rows = _round_up(TB * TT, 8)
    lane_D = _round_up(D, 128)
    xy_tile = TB * _round_up(TT, 16) * lane_D * 2           # bf16 input tile
    inputs = 2 * xy_tile                                    # BlockSpec double-buffer
    preact = rows * 3 * Hp * 4                              # f32 gate pre-activations
    gates = 3 * rows * Hp * act_bytes                       # i / g / o intermediates
    hbuf = rows * Hp * 4                                    # h (f32) before the time max
    scratch = _round_up(TB, 8) * Hp * 4                     # running-max accumulator
    weights = _round_up(D, 16) * 3 * Hp * 2 + 8 * 3 * Hp * 4 + 8 * Hp * 4
    return inputs + preact + gates + hbuf + scratch + weights


def _select_tiles(B, T, D, Hp, budget_bytes, act_bytes, *,
                  rows_target=4096, t_tile_max=128):
    """Pick (TB, TT, B_pad, T_pad).  TT is a multiple of 16 (bf16 sublane pack);
    aim for ~rows_target = TB*TT rows per grid step, bounded by the padded VMEM
    budget of the current chip generation."""
    TT = _round_up(T, 16) if T <= t_tile_max else t_tile_max
    T_pad = _round_up(T, TT)

    if B * TT <= rows_target:
        # Whole batch fits in one step; keep >=2 batch tiles when the batch is
        # big enough so v7x megacore has work for both TensorCores.
        TB = B if B < 16 else _round_up(-(-B // 2), 8)
    else:
        TB = max(8, _round_up(-(-rows_target // TT), 8))
        TB = min(TB, _round_up(B, 8))

    # Shrink until the layout-padded footprint fits the per-chip budget.
    while TB > 8 and _vmem_step_bytes(TB, TT, D, Hp, act_bytes) > budget_bytes:
        TB = max(8, _round_up(TB // 2, 8))
    while TT > 16 and _vmem_step_bytes(TB, TT, D, Hp, act_bytes) > budget_bytes:
        TT = max(16, _round_up(TT // 2, 16))
        T_pad = _round_up(T, TT)

    B_pad = TB if TB >= B else _round_up(B, TB)
    return TB, TT, B_pad, T_pad


# --------------------------------------------------------------------------- #
# Wrapper
# --------------------------------------------------------------------------- #
def discriminator_rnn_forward(x, y, params, *, rows_target=4096, t_tile_max=128):
    """x: [B, T, Dx], y: [B, T, Dy] -> [B, 1] float32 (== Discriminator_RNN.forward)."""
    B, T, Dx = x.shape
    Dy = y.shape[-1]
    D = Dx + Dy
    H = params["fc_weight"].shape[-1]
    assert params["fc_weight"].shape[0] == 1, "kernel epilogue assumes target_size == 1"
    Hp = _round_up(H, 128)                        # per-gate lane-aligned width

    vmem_limit, vmem_budget, use_bf16_act = _chip_profile()
    act_dtype = jnp.bfloat16 if use_bf16_act else jnp.float32
    act_bytes = 2 if use_bf16_act else 4

    TB, TT, B_pad, T_pad = _select_tiles(
        B, T, D, Hp, vmem_budget, act_bytes,
        rows_target=rows_target, t_tile_max=t_tile_max)

    # ---- weights: gate-fused [D, 3*Hp]; live gates i, g, o of PyTorch's i,f,g,o ----
    w_ih = params["weight_ih"].astype(jnp.float32)            # [4H, D]
    b_full = (params["bias_ih"] + params["bias_hh"]).astype(jnp.float32)
    gate_rows = (slice(0, H), slice(2 * H, 3 * H), slice(3 * H, 4 * H))   # i, g, o
    w_fused = jnp.zeros((D, 3 * Hp), jnp.float32)
    bias = jnp.zeros((1, 3 * Hp), jnp.float32)
    for g, r in enumerate(gate_rows):
        w_fused = w_fused.at[:, g * Hp:g * Hp + H].set(w_ih[r, :].T)
        bias = bias.at[:, g * Hp:g * Hp + H].set(b_full[r])
    w_fused = w_fused.astype(jnp.bfloat16)
    wfc = jnp.zeros((1, Hp), jnp.float32).at[0, :H].set(
        params["fc_weight"][0].astype(jnp.float32))
    bfc = params["fc_bias"].astype(jnp.float32).reshape(1)    # -> SMEM scalar

    # ---- inputs: concat once on the host; pad batch / time to the tile grid ----
    # TODO(synk): for very large B*T a lane-dense layout (transpose so B*T is the
    # minor dim) would remove the D->128 lane padding entirely; not needed here.
    xy = jnp.concatenate([x, y], axis=2).astype(jnp.bfloat16)            # [B, T, D]
    if B_pad != B or T_pad != T:
        xy = jnp.pad(xy, ((0, B_pad - B), (0, T_pad - T), (0, 0)))

    grid = (B_pad // TB, T_pad // TT)
    kernel = functools.partial(_disc_rnn_kernel, seq_len=T,
                               time_padded=(T_pad != T), act_dtype=act_dtype)

    out = pl.pallas_call(
        kernel,
        out_shape=jax.ShapeDtypeStruct((B_pad, 1), jnp.float32),
        grid_spec=pltpu.PrefetchScalarGridSpec(
            num_scalar_prefetch=0,
            grid=grid,
            in_specs=[
                pl.BlockSpec((TB, TT, D), lambda b, t: (b, t, 0)),       # xy tile
                pl.BlockSpec((D, 3 * Hp), lambda b, t: (0, 0)),          # fused gate W
                pl.BlockSpec((1, 3 * Hp), lambda b, t: (0, 0)),          # fused gate bias
                pl.BlockSpec((1, Hp), lambda b, t: (0, 0)),              # fc weight
                pl.BlockSpec(memory_space=pltpu.MemorySpace.SMEM),       # fc bias scalar
            ],
            out_specs=pl.BlockSpec((TB, 1), lambda b, t: (b, 0)),        # resident over t
            scratch_shapes=[pltpu.VMEM((TB, Hp), jnp.float32)],          # running max
        ),
        compiler_params=pltpu.CompilerParams(
            # batch tiles -> both TensorCores (v7x); time axis carries the max accum.
            dimension_semantics=("parallel", "arbitrary"),
            vmem_limit_bytes=vmem_limit,
        ),
    )(xy, w_fused, bias, wfc, bfc)

    return out[:B]


# --------------------------------------------------------------------------- #
# Params / reference / demo
# --------------------------------------------------------------------------- #
def init_params(key, predictor_dim, hidden_dim, target_size=1):
    """Deterministic init mimicking PyTorch's U(-1/sqrt(H), 1/sqrt(H))."""
    ks = jax.random.split(key, 5)
    k = 1.0 / np.sqrt(hidden_dim)
    return {
        "weight_ih": jax.random.uniform(ks[0], (4 * hidden_dim, predictor_dim),
                                        jnp.float32, -k, k),
        "bias_ih": jax.random.uniform(ks[1], (4 * hidden_dim,), jnp.float32, -k, k),
        "bias_hh": jax.random.uniform(ks[2], (4 * hidden_dim,), jnp.float32, -k, k),
        "fc_weight": jax.random.uniform(ks[3], (target_size, hidden_dim),
                                        jnp.float32, -k, k),
        "fc_bias": jax.random.uniform(ks[4], (target_size,), jnp.float32, -k, k),
    }


def reference_forward(x, y, params, hidden_dim):
    """Pure-JAX (f32) reference implementing the same PyTorch semantics."""
    H = hidden_dim
    xc = jnp.concatenate([x, y], axis=2)
    gates = jnp.einsum("btd,gd->btg", xc, params["weight_ih"]) \
            + params["bias_ih"] + params["bias_hh"]
    i_g = jax.nn.sigmoid(gates[..., 0:H])
    g_g = jnp.tanh(gates[..., 2 * H:3 * H])
    o_g = jax.nn.sigmoid(gates[..., 3 * H:4 * H])
    h = o_g * jnp.tanh(i_g * g_g)
    h_max = jnp.max(h, axis=1)
    return jax.nn.sigmoid(h_max @ params["fc_weight"].T + params["fc_bias"])


if __name__ == "__main__":
    key = jax.random.PRNGKey(0)
    k_x, k_y, k_p, k_x2, k_y2 = jax.random.split(key, 5)

    Dx, Dy = 5, 3                                  # predictor_dim = Dx + Dy = 8
    predictor_dim = Dx + Dy
    params = init_params(k_p, predictor_dim, HIDDEN, target_size=1)

    # Case 1: small demo shape (single batch / time tile).
    B, T = 2, 16
    x = jax.random.normal(k_x, (B, T, Dx), jnp.float32)
    y = jax.random.normal(k_y, (B, T, Dy), jnp.float32)
    out = jax.block_until_ready(discriminator_rnn_forward(x, y, params))
    ref = jax.block_until_ready(reference_forward(x, y, params, HIDDEN))
    assert out.shape == (B, 1)
    # Tolerance relaxed vs. the f32 reference: inputs/weights run in bf16 (and
    # activations in bf16 on v6e/v7x).
    np.testing.assert_allclose(np.asarray(out), np.asarray(ref), rtol=2e-2, atol=2e-2)

    # Case 2: ragged T + multiple time tiles (exercises the streaming max, the
    # t==0 / t==last pl.when phases, and the padded-time mask).
    B2, T2 = 4, 24
    x2 = jax.random.normal(k_x2, (B2, T2, Dx), jnp.float32)
    y2 = jax.random.normal(k_y2, (B2, T2, Dy), jnp.float32)
    out2 = jax.block_until_ready(
        discriminator_rnn_forward(x2, y2, params, t_tile_max=16))
    ref2 = jax.block_until_ready(reference_forward(x2, y2, params, HIDDEN))
    assert out2.shape == (B2, 1)
    np.testing.assert_allclose(np.asarray(out2), np.asarray(ref2), rtol=2e-2, atol=2e-2)

    print("KERNEL_OK")
</pallas_src>

<mosaic_0001>
module attributes {stable_mosaic.version = 11 : i64} {
  func.func @_disc_rnn_kernel(%arg0: i32, %arg1: i32, %arg2: memref<2x16x8xbf16, #tpu.memory_space<vmem>>, %arg3: memref<8x384xbf16, #tpu.memory_space<vmem>>, %arg4: memref<1x384xf32, #tpu.memory_space<vmem>>, %arg5: memref<1x128xf32, #tpu.memory_space<vmem>>, %arg6: memref<1xf32, #tpu.memory_space<smem>>, %arg7: memref<2x1xf32, #tpu.memory_space<vmem>>, %arg8: memref<2x128xf32, #tpu.memory_space<vmem>>) attributes {dimension_semantics = [#tpu.dimension_semantics<parallel>, #tpu.dimension_semantics<arbitrary>], iteration_bounds = array<i64: 1, 1>, scalar_prefetch = 0 : i64, scratch_operands = 1 : i64, tpu.core_type = #tpu.core_type<tc>, window_params = [{transform_indices = @transform_0, window_bounds = array<i64: 2, 16, 8>}, {pipeline_mode = #tpu.pipeline_mode<synchronous>, transform_indices = @transform_1, window_bounds = array<i64: 8, 384>}, {pipeline_mode = #tpu.pipeline_mode<synchronous>, transform_indices = @transform_2, window_bounds = array<i64: 1, 384>}, {pipeline_mode = #tpu.pipeline_mode<synchronous>, transform_indices = @transform_3, window_bounds = array<i64: 1, 128>}, {transform_indices = @transform_4, window_bounds = array<i64: 1>}, {transform_indices = @transform_5, window_bounds = array<i64: 2, 1>}]} {
    %c0_i32 = arith.constant 0 : i32
    %0 = arith.cmpi eq, %arg1, %c0_i32 : i32
    %1 = arith.extui %0 : i1 to i32
    %c0_i32_0 = arith.constant 0 : i32
    %2 = arith.cmpi ne, %1, %c0_i32_0 : i32
    scf.if %2 {
      %cst_16 = arith.constant 0xFF800000 : f32
      %35 = vector.broadcast %cst_16 : f32 to vector<2x128xf32>
      %c0_17 = arith.constant 0 : index
      %c0_18 = arith.constant 0 : index
      %36 = vector.load %arg8[%c0_17, %c0_18] : memref<2x128xf32, #tpu.memory_space<vmem>>, vector<2x128xf32>
      tpu.vector_store %arg8[%c0_17, %c0_18], %35 {strides = array<i32>} : memref<2x128xf32, #tpu.memory_space<vmem>>, vector<2x128xf32>,
    } else {
    }
    %c0 = arith.constant 0 : index
    %c0_1 = arith.constant 0 : index
    %c0_2 = arith.constant 0 : index
    %3 = vector.load %arg2[%c0, %c0_1, %c0_2] : memref<2x16x8xbf16, #tpu.memory_space<vmem>>, vector<2x16x8xbf16>
    %4 = vector.shape_cast %3 : vector<2x16x8xbf16> to vector<32x8xbf16>
    %c0_3 = arith.constant 0 : index
    %c0_4 = arith.constant 0 : index
    %5 = vector.load %arg3[%c0_3, %c0_4] : memref<8x384xbf16, #tpu.memory_space<vmem>>, vector<8x384xbf16>
    %cst = arith.constant dense<0.000000e+00> : vector<32x384xf32>
    %6 = tpu.matmul %4, %5, %cst {dimension_numbers = #tpu.dot_dimension_numbers<[1], [0], [0], [1], [0, 0, 1, 1], [], []>} : vector<32x8xbf16>, vector<8x384xbf16>, vector<32x384xf32> -> vector<32x384xf32>
    %c0_5 = arith.constant 0 : index
    %c0_6 = arith.constant 0 : index
    %7 = vector.load %arg4[%c0_5, %c0_6] : memref<1x384xf32, #tpu.memory_space<vmem>>, vector<1x384xf32>
    %8 = vector.broadcast %7 : vector<1x384xf32> to vector<32x384xf32>
    %9 = arith.addf %6, %8 : vector<32x384xf32>
    %10 = vector.extract_strided_slice %9 {offsets = [0, 0], sizes = [32, 128], strides = [1, 1]} : vector<32x384xf32> to vector<32x128xf32>
    %11 = arith.negf %10 : vector<32x128xf32>
    %12 = math.exp %11 : vector<32x128xf32>
    %cst_7 = arith.constant 1.000000e+00 : f32
    %13 = vector.broadcast %cst_7 : f32 to vector<32x128xf32>
    %14 = arith.addf %13, %12 : vector<32x128xf32>
    %15 = arith.divf %13, %14 : vector<32x128xf32>
    %16 = vector.extract_strided_slice %9 {offsets = [0, 128], sizes = [32, 128], strides = [1, 1]} : vector<32x384xf32> to vector<32x128xf32>
    %17 = math.tanh %16 : vector<32x128xf32>
    %18 = vector.extract_strided_slice %9 {offsets = [0, 256], sizes = [32, 128], strides = [1, 1]} : vector<32x384xf32> to vector<32x128xf32>
    %19 = arith.negf %18 : vector<32x128xf32>
    %20 = math.exp %19 : vector<32x128xf32>
    %cst_8 = arith.constant 1.000000e+00 : f32
    %21 = vector.broadcast %cst_8 : f32 to vector<32x128xf32>
    %22 = arith.addf %21, %20 : vector<32x128xf32>
    %23 = arith.divf %21, %22 : vector<32x128xf32>
    %24 = arith.mulf %15, %17 : vector<32x128xf32>
    %25 = math.tanh %24 : vector<32x128xf32>
    %26 = arith.mulf %23, %25 : vector<32x128xf32>
    %27 = vector.shape_cast %26 : vector<32x128xf32> to vector<2x16x128xf32>
    %c0_9 = arith.constant 0 : index
    %c0_10 = arith.constant 0 : index
    %28 = vector.load %arg8[%c0_9, %c0_10] : memref<2x128xf32, #tpu.memory_space<vmem>>, vector<2x128xf32>
    %cst_11 = arith.constant dense<0xFF800000> : vector<2x128xf32>
    %29 = vector.multi_reduction <maximumf>, %27, %cst_11 [1] : vector<2x16x128xf32> to vector<2x128xf32>
    %30 = arith.maximumf %28, %29 : vector<2x128xf32>
    %c0_12 = arith.constant 0 : index
    %c0_13 = arith.constant 0 : index
    %31 = vector.load %arg8[%c0_12, %c0_13] : memref<2x128xf32, #tpu.memory_space<vmem>>, vector<2x128xf32>
    tpu.vector_store %arg8[%c0_12, %c0_13], %30 {strides = array<i32>} : memref<2x128xf32, #tpu.memory_space<vmem>>, vector<2x128xf32>,
    %c0_i32_14 = arith.constant 0 : i32
    %32 = arith.cmpi eq, %arg1, %c0_i32_14 : i32
    %33 = arith.extui %32 : i1 to i32
    %c0_i32_15 = arith.constant 0 : i32
    %34 = arith.cmpi ne, %33, %c0_i32_15 : i32
    scf.if %34 {
      %c0_16 = arith.constant 0 : index
      %c0_17 = arith.constant 0 : index
      %35 = vector.load %arg8[%c0_16, %c0_17] : memref<2x128xf32, #tpu.memory_space<vmem>>, vector<2x128xf32>
      %c0_18 = arith.constant 0 : index
      %c0_19 = arith.constant 0 : index
      %36 = vector.load %arg5[%c0_18, %c0_19] : memref<1x128xf32, #tpu.memory_space<vmem>>, vector<1x128xf32>
      %37 = vector.broadcast %36 : vector<1x128xf32> to vector<2x128xf32>
      %38 = arith.mulf %35, %37 : vector<2x128xf32>
      %cst_20 = arith.constant dense<0.000000e+00> : vector<2xf32>
      %39 = vector.multi_reduction <add>, %38, %cst_20 [1] : vector<2x128xf32> to vector<2xf32>
      %40 = vector.shape_cast %39 : vector<2xf32> to vector<2x1xf32>
      %c0_21 = arith.constant 0 : index
      %41 = memref.load %arg6[%c0_21] : memref<1xf32, #tpu.memory_space<smem>>
      %42 = vector.broadcast %41 : f32 to vector<2x1xf32>
      %43 = arith.addf %40, %42 : vector<2x1xf32>
      %44 = arith.negf %43 : vector<2x1xf32>
      %45 = math.exp %44 : vector<2x1xf32>
      %cst_22 = arith.constant 1.000000e+00 : f32
      %46 = vector.broadcast %cst_22 : f32 to vector<2x1xf32>
      %47 = arith.addf %46, %45 : vector<2x1xf32>
      %48 = arith.divf %46, %47 : vector<2x1xf32>
      %c0_23 = arith.constant 0 : index
      %c0_24 = arith.constant 0 : index
      %49 = vector.load %arg7[%c0_23, %c0_24] : memref<2x1xf32, #tpu.memory_space<vmem>>, vector<2x1xf32>
      tpu.vector_store %arg7[%c0_23, %c0_24], %48 {strides = array<i32>} : memref<2x1xf32, #tpu.memory_space<vmem>>, vector<2x1xf32>,
    } else {
    }
    return
  }
  func.func @transform_0(%arg0: i32, %arg1: i32) -> (i32, i32, i32) {
    %c0_i32 = arith.constant 0 : i32
    %c0_i32_0 = arith.constant 0 : i32
    return %arg0, %arg1, %c0_i32 : i32, i32, i32
  }
  func.func @transform_1(%arg0: i32, %arg1: i32) -> (i32, i32) {
    %c0_i32 = arith.constant 0 : i32
    %c0_i32_0 = arith.constant 0 : i32
    %c0_i32_1 = arith.constant 0 : i32
    return %c0_i32, %c0_i32_0 : i32, i32
  }
  func.func @transform_2(%arg0: i32, %arg1: i32) -> (i32, i32) {
    %c0_i32 = arith.constant 0 : i32
    %c0_i32_0 = arith.constant 0 : i32
    %c0_i32_1 = arith.constant 0 : i32
    return %c0_i32, %c0_i32_0 : i32, i32
  }
  func.func @transform_3(%arg0: i32, %arg1: i32) -> (i32, i32) {
    %c0_i32 = arith.constant 0 : i32
    %c0_i32_0 = arith.constant 0 : i32
    %c0_i32_1 = arith.constant 0 : i32
    return %c0_i32, %c0_i32_0 : i32, i32
  }
  func.func @transform_4(%arg0: i32, %arg1: i32) -> i32 {
    %c0_i32 = arith.constant 0 : i32
    %c0_i32_0 = arith.constant 0 : i32
    return %c0_i32 : i32
  }
  func.func @transform_5(%arg0: i32, %arg1: i32) -> (i32, i32) {
    %c0_i32 = arith.constant 0 : i32
    %c0_i32_0 = arith.constant 0 : i32
    return %arg0, %c0_i32 : i32, i32
  }
}

</mosaic_0001>

<llo_original>
// kernel: tpu_custom_call.1
$region0: #{tpu_custom_call.1}
  #allocation0 [shape = 'u32[]', space=smem, size = 0x4, offset = 0x4, fixed_abs, tag = 'smem constant byte address 0x4 - core index']
  #allocation1 [shape = 'u32[144,128]{1,0:T(1,128)}', space=vmem, size = 0x12000, scoped, tag = 'internal scratch']
  #allocation2 [shape = 'f32[2,128]{1,0:T(2,128)}', space=vmem, size = 0x400, scoped, tag = 'scratch operand']
  #allocation3 [shape = 'f32[1]{0:T(128)S(6)}', space=smem, size = 0x200, scoped, tag = 'scoped memory for tpu_custom_call.1']
  %s0 = inlined_call_operand.vmem [shape: bf16[2,16,8], index: 0, kind: input, shape index: {}]
  %s1 = inlined_call_operand.vmem [shape: bf16[8,384], index: 1, kind: input, shape index: {}]
  %s2 = inlined_call_operand.vmem [shape: f32[1,384], index: 2, kind: input, shape index: {}]
  %s3 = inlined_call_operand.vmem [shape: f32[1,128], index: 3, kind: input, shape index: {}]
  %s4 = inlined_call_operand.<no memory space> [shape: f32[1], index: 4, kind: input, shape index: {}]
  %s5 = inlined_call_operand.vmem [shape: f32[2,1], index: 5, kind: output, shape index: {}]
  %s6 = sld [smem:[#allocation0]]
  $region38: #{tpu_custom_call.1} parent=0
    _
  %s8 = ssub.s32 1, %s6
  %s9 = scalar_select 0, %s8, %s6
  %10 = sst [smem:[#allocation3]] %s4
  // Predicated region
  $region2: #{tpu_custom_call.1} parent=0 // pred_check
    _
  $region3: #{tpu_custom_call.1} parent=0 // pred_check_branch
    %12 = sbr.rel (0) target = $region5
  $region4: #{tpu_custom_call.1} parent=0 // pred_region
    _
  $region5: #{tpu_custom_call.1} parent=0 // pred_fallthru
    _
  // Predicated region
  $region6: #{tpu_custom_call.1} parent=0 // pred_check
    _
  $region7: #{tpu_custom_call.1} parent=0 // pred_check_branch
    %14 = sbr.rel (0) target = $region9
  $region8: #{tpu_custom_call.1} parent=0 // pred_region
    _
  $region9: #{tpu_custom_call.1} parent=0 // pred_fallthru
    _
  // Predicated region
  $region10: #{tpu_custom_call.1} parent=0 // pred_check
    _
  $region11: #{tpu_custom_call.1} parent=0 // pred_check_branch
    %16 = sbr.rel (0) target = $region13
  $region12: #{tpu_custom_call.1} parent=0 // pred_region
    _
  $region13: #{tpu_custom_call.1} parent=0 // pred_fallthru
    _
  // Predicated region
  $region14: #{tpu_custom_call.1} parent=0 // pred_check
    _
  $region15: #{tpu_custom_call.1} parent=0 // pred_check_branch
    %18 = sbr.rel (0) target = $region17
  $region16: #{tpu_custom_call.1} parent=0 // pred_region
    _
  $region17: #{tpu_custom_call.1} parent=0 // pred_fallthru
    _
  // Predicated region
  $region18: #{tpu_custom_call.1} parent=0 // pred_check
    _
  $region19: #{tpu_custom_call.1} parent=0 // pred_check_branch
    %20 = sbr.rel (0) target = $region21
  $region20: #{tpu_custom_call.1} parent=0 // pred_region
    _
  $region21: #{tpu_custom_call.1} parent=0 // pred_fallthru
    _
  %p22 = scmp.eq.s32.totalorder 0, 0
  // Predicated region
  $region22: #{tpu_custom_call.1} parent=0 // pred_check
    %p23 = pneg %p22
  $region23: #{tpu_custom_call.1} parent=0 // pred_check_branch
    %25 = sbr.rel (%p23) target = $region25
  $region24: #{tpu_custom_call.1} parent=0 // pred_region
    %26 = vst [vmem:[#allocation2] sm:$0x3] -inf
  $region25: #{tpu_custom_call.1} parent=0 // pred_fallthru
    _
  %v27 = vld [vmem:[%s0] sm:$0xf]
  %v28 = vld [vmem:[%s0 + $0x4] sm:$0xf]
  %v29 = vld [vmem:[%s0 + $0x8] sm:$0xf]
  %v30 = vld [vmem:[%s0 + $0xc] sm:$0xf]
  %v31 = vld [vmem:[%s1] sm:$0xff]
  %v32 = vld [vmem:[%s1 + $0x8] sm:$0xf]
  %v33 = vld [vmem:[%s2] sm:$0x7]
  %v35 = vlaneseq
  %v36 = vshrl.u32 %v35, 7
  %v37 = vsub.s32 0, %v36
  %v38 = vrot.slane %v33, %v37
  %v39 = vlaneseq
  %v40 = vshrl.u32 %v39, 7
  %v41 = vsub.s32 1, %v40
  %v42 = vrot.slane %v33, %v41
  %v43 = vlaneseq
  %v44 = vshrl.u32 %v43, 7
  %v45 = vsub.s32 2, %v44
  %v46 = vrot.slane %v33, %v45
  %v54 = vunpack.c.l.b16 %v27
  %v55 = vunpack.c.l.b16 %v28
  %v56 = vunpack.c.l.b16 %v29
  %v57 = vunpack.c.l.b16 %v30
  %v58 = vpack.c.b16 %v55, %v54
  %v59 = vpack.c.b16 %v57, %v56
  %v62 = vunpack.c.l.b16 %v31
  %v63 = vunpack.c.h.b16 %v31
  %v64 = vunpack.c.l.b16 %v32
  %v65 = vpack.c.b16 %v62, %v62
  %v66 = vpack.c.b16 %v63, %v63
  %v67 = vpack.c.b16 %v64, %v64
  %vm68 = vcmask 64512
  %v70 = vsel %vm68, %v58, 0
  %v73 = vsel %vm68, %v59, 0
  %vm75 = vcmask 1043456
  %v77 = vsel %vm75, %v65, 0
  %v80 = vsel %vm75, %v66, 0
  %v83 = vsel %vm75, %v67, 0
  %85 = vmatprep.subr.bf16.mxu0 0
  %86 = vmatpush1.bf16.msra.mxu0 0
  %87 = vmatprep.subr.bf16.mxu0 0
  %88 = vmatpush1.bf16.msra.mxu0 0
  %89 = vmatprep.subr.bf16.mxu0 0
  %90 = vmatpush1.bf16.msra.mxu0 0
  %91 = vmatprep.subr.bf16.mxu0 0
  %92 = vmatpush1.bf16.msra.mxu0 0
  %93 = vmatprep.subr.bf16.mxu0 0
  %94 = vmatpush1.bf16.msra.mxu0 0
  %95 = vmatprep.subr.bf16.mxu0 0
  %96 = vmatpush1.bf16.msra.mxu0 0
  %97 = vmatprep.subr.bf16.mxu0 0
  %98 = vmatpush1.bf16.msra.mxu0 0
  %99 = vmatprep.subr.bf16.mxu0 %v80
  %100 = vmatpush1.bf16.msra.mxu0 %v77
  %101 = vmatprep.subr.bf16.mxu0 0
  %102 = vmatpush2.bf16.msra.mxu0 0
  %103 = vmatprep.subr.bf16.mxu0 0
  %104 = vmatpush2.bf16.msra.mxu0 0
  %105 = vmatprep.subr.bf16.mxu0 0
  %106 = vmatpush2.bf16.msra.mxu0 0
  %107 = vmatprep.subr.bf16.mxu0 0
  %108 = vmatpush2.bf16.msra.mxu0 0
  %109 = vmatprep.subr.bf16.mxu0 0
  %110 = vmatpush2.bf16.msra.mxu0 0
  %111 = vmatprep.subr.bf16.mxu0 0
  %112 = vmatpush2.bf16.msra.mxu0 0
  %113 = vmatprep.subr.bf16.mxu0 0
  %114 = vmatpush2.bf16.msra.mxu0 0
  %115 = vmatprep.subr.bf16.mxu0 0
  %116 = vmatpush2.bf16.msra.mxu0 0
  %117 = vmatprep.mubr.bf16.mxu0 0
  %118 = vmatmul.mubr.bf16.gmra.mxu0 %v70
  %v119 = vpop.f32.mrf.mxu0
  %v120 = vadd.f32 %v38, %v119
  %v121 = vpop.f32.mrf.mxu0
  %v122 = vadd.f32 %v42, %v121
  %v123 = vpop.f32.mrf.mxu0
  %v124 = vadd.f32 %v38, %v123
  %v125 = vpop.f32.mrf.mxu0
  %v126 = vadd.f32 %v42, %v125
  %127 = vmatprep.mubr.bf16.mxu0 0
  %128 = vmatmul.mubr.bf16.gmra.mxu0 %v73
  %v129 = vpop.f32.mrf.mxu0
  %v130 = vadd.f32 %v38, %v129
  %v131 = vpop.f32.mrf.mxu0
  %v132 = vadd.f32 %v42, %v131
  %v133 = vpop.f32.mrf.mxu0
  %v134 = vadd.f32 %v38, %v133
  %v135 = vpop.f32.mrf.mxu0
  %v136 = vadd.f32 %v42, %v135
  %137 = vdwg.mxu0
  %138 = vmatprep.subr.bf16.mxu0 0
  %139 = vmatpush1.bf16.msra.mxu0 0
  %140 = vmatprep.subr.bf16.mxu0 0
  %141 = vmatpush1.bf16.msra.mxu0 0
  %142 = vmatprep.subr.bf16.mxu0 0
  %143 = vmatpush1.bf16.msra.mxu0 0
  %144 = vmatprep.subr.bf16.mxu0 0
  %145 = vmatpush1.bf16.msra.mxu0 0
  %146 = vmatprep.subr.bf16.mxu0 0
  %147 = vmatpush1.bf16.msra.mxu0 0
  %148 = vmatprep.subr.bf16.mxu0 0
  %149 = vmatpush1.bf16.msra.mxu0 0
  %150 = vmatprep.subr.bf16.mxu0 0
  %151 = vmatpush1.bf16.msra.mxu0 0
  %152 = vmatprep.subr.bf16.mxu0 0
  %153 = vmatpush1.bf16.msra.mxu0 %v83
  %154 = vmatprep.subr.bf16.mxu0 0
  %155 = vmatpush2.bf16.msra.mxu0 0
  %156 = vmatprep.subr.bf16.mxu0 0
  %157 = vmatpush2.bf16.msra.mxu0 0
  %158 = vmatprep.subr.bf16.mxu0 0
  %159 = vmatpush2.bf16.msra.mxu0 0
  %160 = vmatprep.subr.bf16.mxu0 0
  %161 = vmatpush2.bf16.msra.mxu0 0
  %162 = vmatprep.subr.bf16.mxu0 0
  %163 = vmatpush2.bf16.msra.mxu0 0
  %164 = vmatprep.subr.bf16.mxu0 0
  %165 = vmatpush2.bf16.msra.mxu0 0
  %166 = vmatprep.subr.bf16.mxu0 0
  %167 = vmatpush2.bf16.msra.mxu0 0
  %168 = vmatprep.subr.bf16.mxu0 0
  %169 = vmatpush2.bf16.msra.mxu0 0
  %170 = vmatprep.mubr.bf16.mxu0 0
  %171 = vmatmul.mubr.bf16.gmra.mxu0 %v70
  %v172 = vpop.f32.mrf.mxu0
  %v173 = vadd.f32 %v46, %v172
  %v174 = vpop.f32.mrf.mxu0
  %v175 = vpop.f32.mrf.mxu0
  %v176 = vadd.f32 %v46, %v175
  %v177 = vpop.f32.mrf.mxu0
  %178 = vmatprep.mubr.bf16.mxu0 0
  %179 = vmatmul.mubr.bf16.gmra.mxu0 %v73
  %v180 = vpop.f32.mrf.mxu0
  %v181 = vadd.f32 %v46, %v180
  %v182 = vpop.f32.mrf.mxu0
  %v183 = vpop.f32.mrf.mxu0
  %v184 = vadd.f32 %v46, %v183
  %v185 = vpop.f32.mrf.mxu0
  %186 = vdwg.mxu0
  %v187 = vxor.u32 %v120, 2147483648
  %v188 = vxor.u32 %v124, 2147483648
  %v189 = vxor.u32 %v130, 2147483648
  %v190 = vxor.u32 %v134, 2147483648
  %v191 = vmul.f32 %v187, 1.442695
  %v192 = vpow.pop %v191
  %v193 = vmul.f32 %v188, 1.442695
  %v194 = vpow.pop %v193
  %v195 = vmul.f32 %v189, 1.442695
  %v196 = vpow.pop %v195
  %v197 = vmul.f32 %v190, 1.442695
  %v198 = vpow.pop %v197
  %v199 = vadd.f32 %v192, 1.0
  %v200 = vadd.f32 %v194, 1.0
  %v201 = vadd.f32 %v196, 1.0
  %v202 = vadd.f32 %v198, 1.0
  %v203 = vrcp.pop %v199
  %v204 = vmul.f32 1.0, %v203
  %v205 = vrcp.pop %v200
  %v206 = vmul.f32 1.0, %v205
  %v207 = vrcp.pop %v201
  %v208 = vmul.f32 1.0, %v207
  %v209 = vrcp.pop %v202
  %v210 = vmul.f32 1.0, %v209
  %v211 = vtanh.pop %v122
  %v212 = vtanh.pop %v126
  %v213 = vtanh.pop %v132
  %v214 = vtanh.pop %v136
  %v215 = vxor.u32 %v173, 2147483648
  %v216 = vxor.u32 %v176, 2147483648
  %v217 = vxor.u32 %v181, 2147483648
  %v218 = vxor.u32 %v184, 2147483648
  %v219 = vmul.f32 %v215, 1.442695
  %v220 = vpow.pop %v219
  %v221 = vmul.f32 %v216, 1.442695
  %v222 = vpow.pop %v221
  %v223 = vmul.f32 %v217, 1.442695
  %v224 = vpow.pop %v223
  %v225 = vmul.f32 %v218, 1.442695
  %v226 = vpow.pop %v225
  %v227 = vadd.f32 %v220, 1.0
  %v228 = vadd.f32 %v222, 1.0
  %v229 = vadd.f32 %v224, 1.0
  %v230 = vadd.f32 %v226, 1.0
  %v231 = vrcp.pop %v227
  %v232 = vmul.f32 1.0, %v231
  %v233 = vrcp.pop %v228
  %v234 = vmul.f32 1.0, %v233
  %v235 = vrcp.pop %v229
  %v236 = vmul.f32 1.0, %v235
  %v237 = vrcp.pop %v230
  %v238 = vmul.f32 1.0, %v237
  %v239 = vmul.f32 %v204, %v211
  %v240 = vmul.f32 %v206, %v212
  %v241 = vmul.f32 %v208, %v213
  %v242 = vmul.f32 %v210, %v214
  %v243 = vtanh.pop %v239
  %v244 = vtanh.pop %v240
  %v245 = vtanh.pop %v241
  %v246 = vtanh.pop %v242
  %v247 = vmul.f32 %v232, %v243
  %v248 = vmul.f32 %v234, %v244
  %v249 = vmul.f32 %v236, %v245
  %v250 = vmul.f32 %v238, %v246
  %v251 = vld [vmem:[#allocation2] sm:$0x3]
  %v252 = vmax.f32 %v247, %v248
  %v253 = vrot.slane %v252, 4
  %v254 = vmax.f32 %v252, %v253
  %v255 = vrot.slane %v254, 2
  %v256 = vmax.f32 %v254, %v255
  %v257 = vrot.slane %v256, 1
  %v258 = vmax.f32 %v256, %v257
  %v259 = vmax.f32 %v249, %v250
  %v260 = vrot.slane %v259, 4
  %v261 = vmax.f32 %v259, %v260
  %v262 = vrot.slane %v261, 2
  %v263 = vmax.f32 %v261, %v262
  %v264 = vrot.slane %v263, 1
  %v265 = vmax.f32 %v263, %v264
  %vm268 = vcmask 1041409
  %v269 = vsel %vm268, %v265, %v258
  %v271 = vmax.f32 %v251, %v269
  %272 = vst [vmem:[#allocation2] sm:$0x3] %v271
  // Predicated region
  $region26: #{tpu_custom_call.1} parent=0 // pred_check
    %p273 = pneg %p22
  $region27: #{tpu_custom_call.1} parent=0 // pred_check_branch
    %275 = sbr.rel (%p273) target = $region29
  $region28: #{tpu_custom_call.1} parent=0 // pred_region
    %v276 = vld [vmem:[#allocation2] sm:$0x3]
    %v277 = vld [vmem:[%s3] sm:$0x1]
    %v279 = vlaneseq
    %v280 = vshrl.u32 %v279, 7
    %v281 = vsub.s32 0, %v280
    %v282 = vrot.slane %v277, %v281
    %v284 = vmul.f32 %v276, %v282
    %vm285 = vcmask 1041408
    %v286 = vsel %vm285, %v284, 0.0
    %287 = vadd.xlane.f32.xlu0 %v286
    %v288 = vpop.xlane.xlu0 %287
    %s289 = sld [smem:[#allocation3]]
    %v290 = vstv %s289
    %v291 = vadd.f32 %v288, %v290
    %v292 = vxor.u32 %v291, 2147483648
    %v293 = vmul.f32 %v292, 1.442695
    %v294 = vpow.pop %v293
    %v295 = vadd.f32 %v294, 1.0
    %v296 = vrcp.pop %v295
    %v297 = vmul.f32 1.0, %v296
    %vm298 = vcmask 1024
    %299 = vst.msk [vmem:[%s5] sm:$0x3] %vm298, %v297
  $region29: #{tpu_custom_call.1} parent=0 // pred_fallthru
    _
  // Predicated region
  $region30: #{tpu_custom_call.1} parent=0 // pred_check
    _
  $region31: #{tpu_custom_call.1} parent=0 // pred_check_branch
    %301 = sbr.rel (0) target = $region33
  $region32: #{tpu_custom_call.1} parent=0 // pred_region
    _
  $region33: #{tpu_custom_call.1} parent=0 // pred_fallthru
    _
  // Predicated region
  $region34: #{tpu_custom_call.1} parent=0 // pred_check
    _
  $region35: #{tpu_custom_call.1} parent=0 // pred_check_branch
    %303 = sbr.rel (0) target = $region37
  $region36: #{tpu_custom_call.1} parent=0 // pred_region
    _
  $region37: #{tpu_custom_call.1} parent=0 // pred_fallthru
    _

</llo_original>
